<compile_context>
chip_gen: v6e
topology: v6e:2x2x1
jax: 0.10.0
libtpu: 0.0.40
codegen_flags: <defaults>
</compile_context>

<pallas_src>
import jax
import jax.numpy as jnp
from jax.experimental import pallas as pl
from jax.experimental.pallas import tpu as pltpu

C_IN = 512       # fixed by the module: nn.Conv2d(512, 1, 1, bias=False)
TM_MAX = 4096    # lane-tile cap over H*W (multiple of 128)
VMEM_LIMIT = 32 << 20  # safe scoped-VMEM request on v5e/v6e/v7x


def _conv1x1_sigmoid_kernel(x_ref, w_ref, o_ref):
    # x_ref: (1, C_IN, TM) activation tile in native NCHW-derived layout
    # w_ref: (1, C_IN)     conv weight (resident; constant block index)
    # o_ref: (1, 1, TM)    output tile (lane-dense: last dim multiple of 128)
    acc = jnp.dot(w_ref[...], x_ref[0], preferred_element_type=jnp.float32)
    o_ref[0] = jax.nn.sigmoid(acc).astype(o_ref.dtype)


def _pick_tile(hw: int, tm_max: int = TM_MAX) -> int:
    """Largest lane tile: multiple of 128, capped at tm_max, no bigger than
    H*W rounded up to the lane width (avoids huge padded blocks for small
    spatial sizes)."""
    hw_pad = ((hw + 127) // 128) * 128
    return max(128, min(tm_max, hw_pad))


def attention_module_forward(x_nchw, conv_weight):
    """x_nchw: (N, 512, H, W); conv_weight: (1, 512, 1, 1). Returns (N, 1, H, W)."""
    N, C, H, W = x_nchw.shape
    assert C == C_IN, f"expected {C_IN} input channels, got {C}"
    HW = H * W
    TM = _pick_tile(HW)
    itemsize = jnp.dtype(x_nchw.dtype).itemsize

    # Free, contiguous reshapes only — no transpose, no extra HBM traffic.
    x = x_nchw.reshape(N, C, HW)
    w = conv_weight.reshape(1, C).astype(x_nchw.dtype)

    out = pl.pallas_call(
        _conv1x1_sigmoid_kernel,
        out_shape=jax.ShapeDtypeStruct((N, 1, HW), x_nchw.dtype),
        grid_spec=pltpu.PrefetchScalarGridSpec(
            num_scalar_prefetch=0,
            grid=(N, pl.cdiv(HW, TM)),
            in_specs=[
                # activations: one batch element, full channel axis, TM lanes
                pl.BlockSpec((1, C, TM), lambda n, j: (n, 0, j)),
                # weight: resident across the whole grid
                pl.BlockSpec((1, C), lambda n, j: (0, 0)),
            ],
            out_specs=pl.BlockSpec((1, 1, TM), lambda n, j: (n, 0, j)),
        ),
        compiler_params=pltpu.CompilerParams(
            # both axes independent -> megacore sharding on v7x, neutral elsewhere
            dimension_semantics=("parallel", "parallel"),
            vmem_limit_bytes=VMEM_LIMIT,
        ),
        cost_estimate=pl.CostEstimate(
            flops=2 * N * C * HW,
            transcendentals=N * HW,
            bytes_accessed=(N * C * HW + N * HW + C) * itemsize,
        ),
    )(x, w)

    return out.reshape(N, 1, H, W)


if __name__ == "__main__":
    key = jax.random.PRNGKey(0)
    kx, kw = jax.random.split(key)

    # Deterministic synthetic weight (matches Conv2d(512, 1, 1, bias=False)).
    conv_weight = (jax.random.normal(kw, (1, C_IN, 1, 1), dtype=jnp.float32)
                   * (1.0 / jnp.sqrt(C_IN)))

    def reference(x, w):
        return jax.nn.sigmoid(
            jnp.einsum("nchw,oc->nohw", x, w.reshape(1, C_IN)))

    # Test 1: small shape with H*W a multiple of the lane width.
    N, H, W = 2, 16, 16
    x = jax.random.normal(kx, (N, C_IN, H, W), dtype=jnp.float32)
    out = jax.block_until_ready(attention_module_forward(x, conv_weight))
    assert out.shape == (N, 1, H, W), out.shape
    assert jnp.allclose(out, reference(x, conv_weight), atol=1e-5, rtol=1e-5)

    # Test 2: H*W NOT a multiple of the lane width / tile -> exercises the
    # masked boundary block (no divisibility requirement).
    N2, H2, W2 = 2, 16, 15  # HW = 240
    x2 = jax.random.normal(kx, (N2, C_IN, H2, W2), dtype=jnp.float32)
    out2 = jax.block_until_ready(attention_module_forward(x2, conv_weight))
    assert out2.shape == (N2, 1, H2, W2), out2.shape
    assert jnp.allclose(out2, reference(x2, conv_weight), atol=1e-5, rtol=1e-5)

    print("KERNEL_OK")
</pallas_src>

<mosaic_0001>
module attributes {stable_mosaic.version = 11 : i64} {
  func.func @_conv1x1_sigmoid_kernel(%arg0: i32, %arg1: i32, %arg2: memref<1x512x256xf32, #tpu.memory_space<vmem>>, %arg3: memref<1x512xf32, #tpu.memory_space<vmem>>, %arg4: memref<1x1x256xf32, #tpu.memory_space<vmem>>) attributes {dimension_semantics = [#tpu.dimension_semantics<parallel>, #tpu.dimension_semantics<parallel>], iteration_bounds = array<i64: 2, 1>, scalar_prefetch = 0 : i64, scratch_operands = 0 : i64, tpu.core_type = #tpu.core_type<tc>, window_params = [{transform_indices = @transform_0, window_bounds = array<i64: 1, 512, 256>}, {pipeline_mode = #tpu.pipeline_mode<synchronous>, transform_indices = @transform_1, window_bounds = array<i64: 1, 512>}, {transform_indices = @transform_2, window_bounds = array<i64: 1, 1, 256>}]} {
    %c0 = arith.constant 0 : index
    %c0_0 = arith.constant 0 : index
    %0 = vector.load %arg3[%c0, %c0_0] : memref<1x512xf32, #tpu.memory_space<vmem>>, vector<1x512xf32>
    %c0_1 = arith.constant 0 : index
    %c0_2 = arith.constant 0 : index
    %c0_3 = arith.constant 0 : index
    %1 = vector.load %arg2[%c0_1, %c0_2, %c0_3] : memref<1x512x256xf32, #tpu.memory_space<vmem>>, vector<1x512x256xf32>
    %2 = vector.shape_cast %1 : vector<1x512x256xf32> to vector<512x256xf32>
    %cst = arith.constant dense<0.000000e+00> : vector<1x256xf32>
    %3 = tpu.matmul %0, %2, %cst {dimension_numbers = #tpu.dot_dimension_numbers<[1], [0], [0], [1], [0, 0, 1, 1], [], []>} : vector<1x512xf32>, vector<512x256xf32>, vector<1x256xf32> -> vector<1x256xf32>
    %4 = arith.negf %3 : vector<1x256xf32>
    %5 = math.exp %4 : vector<1x256xf32>
    %cst_4 = arith.constant 1.000000e+00 : f32
    %6 = vector.broadcast %cst_4 : f32 to vector<1x256xf32>
    %7 = arith.addf %6, %5 : vector<1x256xf32>
    %8 = arith.divf %6, %7 : vector<1x256xf32>
    %c0_5 = arith.constant 0 : index
    %c0_6 = arith.constant 0 : index
    %c0_7 = arith.constant 0 : index
    %9 = vector.load %arg4[%c0_5, %c0_6, %c0_7] : memref<1x1x256xf32, #tpu.memory_space<vmem>>, vector<1x1x256xf32>
    %10 = vector.shape_cast %9 : vector<1x1x256xf32> to vector<1x256xf32>
    %11 = vector.shape_cast %8 : vector<1x256xf32> to vector<1x1x256xf32>
    tpu.vector_store %arg4[%c0_5, %c0_6, %c0_7], %11 {strides = array<i32>} : memref<1x1x256xf32, #tpu.memory_space<vmem>>, vector<1x1x256xf32>,
    return
  }
  func.func @transform_0(%arg0: i32, %arg1: i32) -> (i32, i32, i32) {
    %c0_i32 = arith.constant 0 : i32
    %c0_i32_0 = arith.constant 0 : i32
    return %arg0, %c0_i32, %arg1 : i32, i32, i32
  }
  func.func @transform_1(%arg0: i32, %arg1: i32) -> (i32, i32) {
    %c0_i32 = arith.constant 0 : i32
    %c0_i32_0 = arith.constant 0 : i32
    %c0_i32_1 = arith.constant 0 : i32
    return %c0_i32, %c0_i32_0 : i32, i32
  }
  func.func @transform_2(%arg0: i32, %arg1: i32) -> (i32, i32, i32) {
    %c0_i32 = arith.constant 0 : i32
    %c0_i32_0 = arith.constant 0 : i32
    return %arg0, %c0_i32, %arg1 : i32, i32, i32
  }
}

</mosaic_0001>

<llo_original>
// kernel: tpu_custom_call.1
$region0: #{tpu_custom_call.1}
  #allocation0 [shape = 'u32[]', space=smem, size = 0x4, offset = 0x4, fixed_abs, tag = 'smem constant byte address 0x4 - core index']
  #allocation1 [shape = 'u32[144,128]{1,0:T(1,128)}', space=vmem, size = 0x12000, scoped, tag = 'internal scratch']
  %s0 = inlined_call_operand.hbm [shape: f32[2,512,256], index: 0, kind: input, shape index: {}]
  %s1 = inlined_call_operand.hbm [shape: f32[1,512], index: 1, kind: input, shape index: {}]
  %s2 = inlined_call_operand.hbm [shape: f32[2,1,256], index: 2, kind: output, shape index: {}]
  %s3 = sld [smem:[#allocation0]]
  $region49: #{tpu_custom_call.1} parent=0
    _
  %s5 = ssub.s32 1, %s3
  %s6 = scalar_select 0, %s5, %s3
  $region1: #{tpu_custom_call.1} parent=0
    #allocation2 [shape = 'u8[1048576]{0}', space=vmem, size = 0x100000, scoped, tag = 'input window, operand 0']
    #allocation3 [shape = 's32[2]{0}', space=sflag, size = 0x8, scoped, tag = 'scoped memory for tpu_custom_call.1']
    #allocation4 [shape = 's32[2]{0}', space=sflag, size = 0x8, scoped, tag = 'scoped memory for tpu_custom_call.1']
    #allocation5 [shape = 'u8[2048]{0}', space=vmem, size = 0x800, scoped, tag = 'input window, operand 1, single buffered']
    #allocation6 [shape = 's32[1]{0}', space=sflag, size = 0x4, scoped, tag = 'scoped memory for tpu_custom_call.1']
    #allocation7 [shape = 'u8[2048]{0}', space=vmem, size = 0x800, scoped, tag = 'output window, operand 0']
    %7 = vsyncpa [#allocation3], 0
    %s8 = scalar_lea.sflag [#allocation3], 1
    %9 = vsyncpa %s8, 0
    %10 = vsyncpa [#allocation6], 0
    %11 = vsyncpa [#allocation4], 0
    %s12 = scalar_lea.sflag [#allocation4], 1
    %13 = vsyncpa %s12, 0
    loop: start=0, step=1, limit=4
    $region2: #{tpu_custom_call.1} parent=1 // loop_pre_header
      _
    $region3: #{tpu_custom_call.1} parent=1 // loop_header
      %s15 = sphi 0, %s19
      %p16 = scmp.ge.s32.totalorder %s15, 4
      %s22 = sphi 0, %s34
      %s23 = sphi 0, %s30
      %s24 = sphi 0, %s22
      %s25 = sphi 0, %s23
      %s26 = sphi 0, %s24
      %s27 = sphi 0, %s25
      %s39 = sphi 0, %s41
      %s42 = sphi 0, %s39
      %s43 = sphi 0, %s42
      %s59 = sphi 0, %s43
      %s63 = sphi 0, %s63
      %s65 = sphi 0, %s63
      %s66 = sphi 0, %s65
      %s80 = sphi 0, %s66
      %s88 = sphi 0, %s90
      %s91 = sphi 0, %s88
      %s92 = sphi 0, %s91
      %s108 = sphi 0, %s92
    $region4: #{tpu_custom_call.1} parent=1 // loop_header_branch
      %18 = sbr.rel (%p16) target = $region8
    $region5: #{tpu_custom_call.1} parent=1 // loop_body
      %s20 = ssub.s32 %s15, 1
      %s21 = ssub.s32 %s15, 2
      %s28 = sadd.s32 1, %s23
      %p29 = scmp.ge.s32.totalorder %s28, 1
      %s30 = scalar_select %p29, 0, %s28
      %s31 = sadd.s32 1, %s22
      %s32 = scalar_select %p29, %s31, %s22
      %p33 = scmp.ge.s32.totalorder %s32, 2
      %s34 = scalar_select %p33, 0, %s32
      %s35 = ssub.s32 %s22, %s34
      %s36 = ssub.s32 %s23, %s30
      %s37 = sor.u32 %s35, %s36
      %p38 = scmp.eq.s32.totalorder %s37, 0
      %s40 = sadd.s32 %s39, 1
      %s41 = scalar_select %p38, %s39, %s40
      %p44 = pneg %p38
      %p45 = scmp.eq.s32.totalorder %s15, 1
      %p46 = por %p44, %p45
      %p47 = scmp.ne.s32.totalorder %s39, %s42
      %p48 = scmp.eq.s32.totalorder %s15, 0
      %p49 = por %p47, %p48
      %p50 = scmp.ne.s32.totalorder %s39, %s42
      %p51 = scmp.eq.s32.totalorder %s20, 1
      %p52 = por %p50, %p51
      %p53 = scmp.ne.s32.totalorder %s42, %s43
      %p54 = scmp.eq.s32.totalorder %s20, 0
      %p55 = por %p53, %p54
      %p56 = scmp.ne.s32.totalorder %s42, %s43
      %p57 = scmp.eq.s32.totalorder %s21, 1
      %p58 = por %p56, %p57
      %p60 = scmp.ne.s32.totalorder %s43, %s59
      %p61 = scmp.eq.s32.totalorder %s21, 0
      %p62 = por %p60, %p61
      %s64 = sadd.s32 %s63, 1
      %p67 = scmp.eq.s32.totalorder %s15, 1
      %p68 = scmp.ne.s32.totalorder %s63, %s65
      %p69 = scmp.eq.s32.totalorder %s15, 0
      %p70 = por %p68, %p69
      %p71 = scmp.ne.s32.totalorder %s63, %s65
      %p72 = scmp.eq.s32.totalorder %s20, 1
      %p73 = por %p71, %p72
      %p74 = scmp.ne.s32.totalorder %s65, %s66
      %p75 = scmp.eq.s32.totalorder %s20, 0
      %p76 = por %p74, %p75
      %p77 = scmp.ne.s32.totalorder %s65, %s66
      %p78 = scmp.eq.s32.totalorder %s21, 1
      %p79 = por %p77, %p78
      %p81 = scmp.ne.s32.totalorder %s66, %s80
      %p82 = scmp.eq.s32.totalorder %s21, 0
      %p83 = por %p81, %p82
      %s84 = ssub.s32 %s22, %s34
      %s85 = ssub.s32 %s23, %s30
      %s86 = sor.u32 %s84, %s85
      %p87 = scmp.eq.s32.totalorder %s86, 0
      %s89 = sadd.s32 %s88, 1
      %s90 = scalar_select %p87, %s88, %s89
      %p93 = pneg %p87
      %p94 = scmp.eq.s32.totalorder %s15, 1
      %p95 = por %p93, %p94
      %p96 = scmp.ne.s32.totalorder %s88, %s91
      %p97 = scmp.eq.s32.totalorder %s15, 0
      %p98 = por %p96, %p97
      %p99 = scmp.ne.s32.totalorder %s88, %s91
      %p100 = scmp.eq.s32.totalorder %s20, 1
      %p101 = por %p99, %p100
      %p102 = scmp.ne.s32.totalorder %s91, %s92
      %p103 = scmp.eq.s32.totalorder %s20, 0
      %p104 = por %p102, %p103
      %p105 = scmp.ne.s32.totalorder %s91, %s92
      %p106 = scmp.eq.s32.totalorder %s21, 1
      %p107 = por %p105, %p106
      %p109 = scmp.ne.s32.totalorder %s92, %s108
      %p110 = scmp.eq.s32.totalorder %s21, 0
      %p111 = por %p109, %p110
      %p112 = scmp.le.s32.totalorder 1, %s15
      %p113 = scmp.lt.s32.totalorder %s15, 3
      %p114 = pnand %p112, %p113
      %p115 = pneg %p114
      // Predicated region
      $region9: #{tpu_custom_call.1} parent=5 // pred_check
        _
      $region10: #{tpu_custom_call.1} parent=5 // pred_check_branch
        %117 = sbr.rel (%p114) target = $region12
      $region11: #{tpu_custom_call.1} parent=5 // pred_region
        %s118 = ssub.s32 %s15, 1
        // Predicated region
        $region13: #{tpu_custom_call.1} parent=11 // pred_check
          %p119 = pneg %p76
        $region14: #{tpu_custom_call.1} parent=11 // pred_check_branch
          %121 = sbr.rel (%p119) target = $region16
        $region15: #{tpu_custom_call.1} parent=11 // pred_region
          %s123 = ssub.s32 64, 64
          %124 = vsyncadd [#allocation6], %s123
          %s126 = sshll.u32 [#allocation5], 4
          %s127 = int_to_ptr.vmem [resolvable:$true] %s126
          %129 = dma.hbm_to_vmem [thread:$0]  %s1, 64, %s127, [#allocation6]
        $region16: #{tpu_custom_call.1} parent=11 // pred_fallthru
          _
      $region12: #{tpu_custom_call.1} parent=5 // pred_fallthru
        _
      %p130 = scmp.lt.s32.totalorder %s15, 2
      // Predicated region
      $region17: #{tpu_custom_call.1} parent=5 // pred_check
        %p131 = pneg %p130
      $region18: #{tpu_custom_call.1} parent=5 // pred_check_branch
        %133 = sbr.rel (%p131) target = $region20
      $region19: #{tpu_custom_call.1} parent=5 // pred_region
        // Predicated region
        $region21: #{tpu_custom_call.1} parent=19 // pred_check
          %p134 = pneg %p49
        $region22: #{tpu_custom_call.1} parent=19 // pred_check_branch
          %136 = sbr.rel (%p134) target = $region24
        $region23: #{tpu_custom_call.1} parent=19 // pred_region
          %s137 = sand.u32 %s39, 1
          %s138 = scalar_lea.sflag [#allocation3], %s137
          %s139 = sand.u32 %s39, 1
          %s140 = smul.addr %s139, 1024
          %s141 = scalar_lea.vmem [#allocation2], %s140
          %s142 = smul.u32 2, %s23
          %s144 = ssub.s32 16384, 16384
          %145 = vsyncadd %s138, %s144
          %s146 = smul.addr %s22, 128
          %s147 = sadd.s32 %s142, %s146
          %s148 = smul.addr %s147, 128
          %s149 = scalar_lea.hbm %s0, %s148
          %s150 = sshll.u32 %s141, 4
          %s151 = int_to_ptr.vmem [resolvable:$true] %s150
          %156 = dma.hbm_to_vmem [thread:$0]  %s149, 16384, %s151, %s138, 256, 256, 16
        $region24: #{tpu_custom_call.1} parent=19 // pred_fallthru
          _
      $region20: #{tpu_custom_call.1} parent=5 // pred_fallthru
        _
      %p157 = scmp.le.s32.totalorder 1, %s15
      %p158 = scmp.lt.s32.totalorder %s15, 3
      %p159 = pnand %p157, %p158
      %p160 = pneg %p159
      // Predicated region
      $region25: #{tpu_custom_call.1} parent=5 // pred_check
        _
      $region26: #{tpu_custom_call.1} parent=5 // pred_check_branch
        %162 = sbr.rel (%p159) target = $region28
      $region27: #{tpu_custom_call.1} parent=5 // pred_region
        %s163 = ssub.s32 %s15, 1
        %s164 = sand.u32 %s42, 1
        %s165 = scalar_lea.sflag [#allocation3], %s164
        %s166 = sand.u32 %s42, 1
        %s167 = smul.addr %s166, 1024
        %s168 = scalar_lea.vmem [#allocation2], %s167
        // Predicated region
        $region29: #{tpu_custom_call.1} parent=27 // pred_check
          %p169 = pneg %p55
        $region30: #{tpu_custom_call.1} parent=27 // pred_check_branch
          %171 = sbr.rel (%p169) target = $region32
        $region31: #{tpu_custom_call.1} parent=27 // pred_region
          %172 = dma.done %s165, 16384
        $region32: #{tpu_custom_call.1} parent=27 // pred_fallthru
          _
        // Predicated region
        $region33: #{tpu_custom_call.1} parent=27 // pred_check
          %p173 = pneg %p76
        $region34: #{tpu_custom_call.1} parent=27 // pred_check_branch
          %175 = sbr.rel (%p173) target = $region36
        $region35: #{tpu_custom_call.1} parent=27 // pred_region
          %176 = dma.done [#allocation6], 64
        $region36: #{tpu_custom_call.1} parent=27 // pred_fallthru
          _
        %s177 = sand.u32 %s42, 1
        %s178 = scalar_lea.sflag [#allocation3], %s177
        %s179 = sand.u32 %s42, 1
        %s180 = smul.addr %s179, 1024
        %s181 = scalar_lea.vmem [#allocation2], %s180
        %p182 = pneg %p55
        %p183 = pneg %p52
        %p184 = pneg %p76
        %p185 = pneg %p73
        %p186 = pneg %p104
        %p187 = pneg %p101
        %s188 = sand.u32 %s91, 1
        %s189 = scalar_lea.sflag [#allocation4], %s188
        %s190 = sand.u32 %s91, 1
        %s191 = smul.addr %s190, 2
        %s192 = scalar_lea.vmem [#allocation7], %s191
        %s193 = smul.u32 2, %s25
        %s194 = smul.u32 2, %s25
        %v195 = vld [vmem:[#allocation5] sm:$0xf]
        %v196 = vld [vmem:[%s168] sm:$0xff]
        %v197 = vld [vmem:[%s168 + $0x8] sm:$0xff]
        %v198 = vld [vmem:[%s168 + $0x10] sm:$0xff]
        %v199 = vld [vmem:[%s168 + $0x18] sm:$0xff]
        %v200 = vld [vmem:[%s168 + $0x20] sm:$0xff]
        %v201 = vld [vmem:[%s168 + $0x28] sm:$0xff]
        %v202 = vld [vmem:[%s168 + $0x30] sm:$0xff]
        %v203 = vld [vmem:[%s168 + $0x38] sm:$0xff]
        %v204 = vld [vmem:[%s168 + $0x40] sm:$0xff]
        %v205 = vld [vmem:[%s168 + $0x48] sm:$0xff]
        %v206 = vld [vmem:[%s168 + $0x50] sm:$0xff]
        %v207 = vld [vmem:[%s168 + $0x58] sm:$0xff]
        %v208 = vld [vmem:[%s168 + $0x60] sm:$0xff]
        %v209 = vld [vmem:[%s168 + $0x68] sm:$0xff]
        %v210 = vld [vmem:[%s168 + $0x70] sm:$0xff]
        %v211 = vld [vmem:[%s168 + $0x78] sm:$0xff]
        %v212 = vld [vmem:[%s168 + $0x80] sm:$0xff]
        %v213 = vld [vmem:[%s168 + $0x88] sm:$0xff]
        %v214 = vld [vmem:[%s168 + $0x90] sm:$0xff]
        %v215 = vld [vmem:[%s168 + $0x98] sm:$0xff]
        %v216 = vld [vmem:[%s168 + $0xa0] sm:$0xff]
        %v217 = vld [vmem:[%s168 + $0xa8] sm:$0xff]
        %v218 = vld [vmem:[%s168 + $0xb0] sm:$0xff]
        %v219 = vld [vmem:[%s168 + $0xb8] sm:$0xff]
        %v220 = vld [vmem:[%s168 + $0xc0] sm:$0xff]
        %v221 = vld [vmem:[%s168 + $0xc8] sm:$0xff]
        %v222 = vld [vmem:[%s168 + $0xd0] sm:$0xff]
        %v223 = vld [vmem:[%s168 + $0xd8] sm:$0xff]
        %v224 = vld [vmem:[%s168 + $0xe0] sm:$0xff]
        %v225 = vld [vmem:[%s168 + $0xe8] sm:$0xff]
        %v226 = vld [vmem:[%s168 + $0xf0] sm:$0xff]
        %v227 = vld [vmem:[%s168 + $0xf8] sm:$0xff]
        %v228 = vld [vmem:[%s168 + $0x100] sm:$0xff]
        %v229 = vld [vmem:[%s168 + $0x108] sm:$0xff]
        %v230 = vld [vmem:[%s168 + $0x110] sm:$0xff]
        %v231 = vld [vmem:[%s168 + $0x118] sm:$0xff]
        %v232 = vld [vmem:[%s168 + $0x120] sm:$0xff]
        %v233 = vld [vmem:[%s168 + $0x128] sm:$0xff]
        %v234 = vld [vmem:[%s168 + $0x130] sm:$0xff]
        %v235 = vld [vmem:[%s168 + $0x138] sm:$0xff]
        %v236 = vld [vmem:[%s168 + $0x140] sm:$0xff]
        %v237 = vld [vmem:[%s168 + $0x148] sm:$0xff]
        %v238 = vld [vmem:[%s168 + $0x150] sm:$0xff]
        %v239 = vld [vmem:[%s168 + $0x158] sm:$0xff]
        %v240 = vld [vmem:[%s168 + $0x160] sm:$0xff]
        %v241 = vld [vmem:[%s168 + $0x168] sm:$0xff]
        %v242 = vld [vmem:[%s168 + $0x170] sm:$0xff]
        %v243 = vld [vmem:[%s168 + $0x178] sm:$0xff]
        %v244 = vld [vmem:[%s168 + $0x180] sm:$0xff]
        %v245 = vld [vmem:[%s168 + $0x188] sm:$0xff]
        %v246 = vld [vmem:[%s168 + $0x190] sm:$0xff]
        %v247 = vld [vmem:[%s168 + $0x198] sm:$0xff]
        %v248 = vld [vmem:[%s168 + $0x1a0] sm:$0xff]
        %v249 = vld [vmem:[%s168 + $0x1a8] sm:$0xff]
        %v250 = vld [vmem:[%s168 + $0x1b0] sm:$0xff]
        %v251 = vld [vmem:[%s168 + $0x1b8] sm:$0xff]
        %v252 = vld [vmem:[%s168 + $0x1c0] sm:$0xff]
        %v253 = vld [vmem:[%s168 + $0x1c8] sm:$0xff]
        %v254 = vld [vmem:[%s168 + $0x1d0] sm:$0xff]
        %v255 = vld [vmem:[%s168 + $0x1d8] sm:$0xff]
        %v256 = vld [vmem:[%s168 + $0x1e0] sm:$0xff]
        %v257 = vld [vmem:[%s168 + $0x1e8] sm:$0xff]
        %v258 = vld [vmem:[%s168 + $0x1f0] sm:$0xff]
        %v259 = vld [vmem:[%s168 + $0x1f8] sm:$0xff]
        %v260 = vld [vmem:[%s168 + $0x200] sm:$0xff]
        %v261 = vld [vmem:[%s168 + $0x208] sm:$0xff]
        %v262 = vld [vmem:[%s168 + $0x210] sm:$0xff]
        %v263 = vld [vmem:[%s168 + $0x218] sm:$0xff]
        %v264 = vld [vmem:[%s168 + $0x220] sm:$0xff]
        %v265 = vld [vmem:[%s168 + $0x228] sm:$0xff]
        %v266 = vld [vmem:[%s168 + $0x230] sm:$0xff]
        %v267 = vld [vmem:[%s168 + $0x238] sm:$0xff]
        %v268 = vld [vmem:[%s168 + $0x240] sm:$0xff]
        %v269 = vld [vmem:[%s168 + $0x248] sm:$0xff]
        %v270 = vld [vmem:[%s168 + $0x250] sm:$0xff]
        %v271 = vld [vmem:[%s168 + $0x258] sm:$0xff]
        %v272 = vld [vmem:[%s168 + $0x260] sm:$0xff]
        %v273 = vld [vmem:[%s168 + $0x268] sm:$0xff]
        %v274 = vld [vmem:[%s168 + $0x270] sm:$0xff]
        %v275 = vld [vmem:[%s168 + $0x278] sm:$0xff]
        %v276 = vld [vmem:[%s168 + $0x280] sm:$0xff]
        %v277 = vld [vmem:[%s168 + $0x288] sm:$0xff]
        %v278 = vld [vmem:[%s168 + $0x290] sm:$0xff]
        %v279 = vld [vmem:[%s168 + $0x298] sm:$0xff]
        %v280 = vld [vmem:[%s168 + $0x2a0] sm:$0xff]
        %v281 = vld [vmem:[%s168 + $0x2a8] sm:$0xff]
        %v282 = vld [vmem:[%s168 + $0x2b0] sm:$0xff]
        %v283 = vld [vmem:[%s168 + $0x2b8] sm:$0xff]
        %v284 = vld [vmem:[%s168 + $0x2c0] sm:$0xff]
        %v285 = vld [vmem:[%s168 + $0x2c8] sm:$0xff]
        %v286 = vld [vmem:[%s168 + $0x2d0] sm:$0xff]
        %v287 = vld [vmem:[%s168 + $0x2d8] sm:$0xff]
        %v288 = vld [vmem:[%s168 + $0x2e0] sm:$0xff]
        %v289 = vld [vmem:[%s168 + $0x2e8] sm:$0xff]
        %v290 = vld [vmem:[%s168 + $0x2f0] sm:$0xff]
        %v291 = vld [vmem:[%s168 + $0x2f8] sm:$0xff]
        %v292 = vld [vmem:[%s168 + $0x300] sm:$0xff]
        %v293 = vld [vmem:[%s168 + $0x308] sm:$0xff]
        %v294 = vld [vmem:[%s168 + $0x310] sm:$0xff]
        %v295 = vld [vmem:[%s168 + $0x318] sm:$0xff]
        %v296 = vld [vmem:[%s168 + $0x320] sm:$0xff]
        %v297 = vld [vmem:[%s168 + $0x328] sm:$0xff]
        %v298 = vld [vmem:[%s168 + $0x330] sm:$0xff]
        %v299 = vld [vmem:[%s168 + $0x338] sm:$0xff]
        %v300 = vld [vmem:[%s168 + $0x340] sm:$0xff]
        %v301 = vld [vmem:[%s168 + $0x348] sm:$0xff]
        %v302 = vld [vmem:[%s168 + $0x350] sm:$0xff]
        %v303 = vld [vmem:[%s168 + $0x358] sm:$0xff]
        %v304 = vld [vmem:[%s168 + $0x360] sm:$0xff]
        %v305 = vld [vmem:[%s168 + $0x368] sm:$0xff]
        %v306 = vld [vmem:[%s168 + $0x370] sm:$0xff]
        %v307 = vld [vmem:[%s168 + $0x378] sm:$0xff]
        %v308 = vld [vmem:[%s168 + $0x380] sm:$0xff]
        %v309 = vld [vmem:[%s168 + $0x388] sm:$0xff]
        %v310 = vld [vmem:[%s168 + $0x390] sm:$0xff]
        %v311 = vld [vmem:[%s168 + $0x398] sm:$0xff]
        %v312 = vld [vmem:[%s168 + $0x3a0] sm:$0xff]
        %v313 = vld [vmem:[%s168 + $0x3a8] sm:$0xff]
        %v314 = vld [vmem:[%s168 + $0x3b0] sm:$0xff]
        %v315 = vld [vmem:[%s168 + $0x3b8] sm:$0xff]
        %v316 = vld [vmem:[%s168 + $0x3c0] sm:$0xff]
        %v317 = vld [vmem:[%s168 + $0x3c8] sm:$0xff]
        %v318 = vld [vmem:[%s168 + $0x3d0] sm:$0xff]
        %v319 = vld [vmem:[%s168 + $0x3d8] sm:$0xff]
        %v320 = vld [vmem:[%s168 + $0x3e0] sm:$0xff]
        %v321 = vld [vmem:[%s168 + $0x3e8] sm:$0xff]
        %v322 = vld [vmem:[%s168 + $0x3f0] sm:$0xff]
        %v323 = vld [vmem:[%s168 + $0x3f8] sm:$0xff]
        %v325 = vlaneseq
        %v326 = vshrl.u32 %v325, 7
        %v327 = vsub.s32 0, %v326
        %v328 = vrot.slane %v195, %v327
        %v329 = vlaneseq
        %v330 = vshrl.u32 %v329, 7
        %v331 = vsub.s32 1, %v330
        %v332 = vrot.slane %v195, %v331
        %v333 = vlaneseq
        %v334 = vshrl.u32 %v333, 7
        %v335 = vsub.s32 2, %v334
        %v336 = vrot.slane %v195, %v335
        %v337 = vlaneseq
        %v338 = vshrl.u32 %v337, 7
        %v339 = vsub.s32 3, %v338
        %v340 = vrot.slane %v195, %v339
        %345 = vmatprep.subr.mxu0 %v227
        %346 = vmatpush1.msra.mxu0 %v226
        %347 = vmatprep.subr.mxu0 %v225
        %348 = vmatpush1.msra.mxu0 %v224
        %349 = vmatprep.subr.mxu0 %v223
        %350 = vmatpush1.msra.mxu0 %v222
        %351 = vmatprep.subr.mxu0 %v221
        %352 = vmatpush1.msra.mxu0 %v220
        %353 = vmatprep.subr.mxu0 %v219
        %354 = vmatpush1.msra.mxu0 %v218
        %355 = vmatprep.subr.mxu0 %v217
        %356 = vmatpush1.msra.mxu0 %v216
        %357 = vmatprep.subr.mxu0 %v215
        %358 = vmatpush1.msra.mxu0 %v214
        %359 = vmatprep.subr.mxu0 %v213
        %360 = vmatpush1.msra.mxu0 %v212
        %361 = vmatprep.subr.mxu0 %v211
        %362 = vmatpush1.msra.mxu0 %v210
        %363 = vmatprep.subr.mxu0 %v209
        %364 = vmatpush1.msra.mxu0 %v208
        %365 = vmatprep.subr.mxu0 %v207
        %366 = vmatpush1.msra.mxu0 %v206
        %367 = vmatprep.subr.mxu0 %v205
        %368 = vmatpush1.msra.mxu0 %v204
        %369 = vmatprep.subr.mxu0 %v203
        %370 = vmatpush1.msra.mxu0 %v202
        %371 = vmatprep.subr.mxu0 %v201
        %372 = vmatpush1.msra.mxu0 %v200
        %373 = vmatprep.subr.mxu0 %v199
        %374 = vmatpush1.msra.mxu0 %v198
        %375 = vmatprep.subr.mxu0 %v197
        %376 = vmatpush1.msra.mxu0 %v196
        %377 = vmatprep.subr.mxu0 %v259
        %378 = vmatpush2.msra.mxu0 %v258
        %379 = vmatprep.subr.mxu0 %v257
        %380 = vmatpush2.msra.mxu0 %v256
        %381 = vmatprep.subr.mxu0 %v255
        %382 = vmatpush2.msra.mxu0 %v254
        %383 = vmatprep.subr.mxu0 %v253
        %384 = vmatpush2.msra.mxu0 %v252
        %385 = vmatprep.subr.mxu0 %v251
        %386 = vmatpush2.msra.mxu0 %v250
        %387 = vmatprep.subr.mxu0 %v249
        %388 = vmatpush2.msra.mxu0 %v248
        %389 = vmatprep.subr.mxu0 %v247
        %390 = vmatpush2.msra.mxu0 %v246
        %391 = vmatprep.subr.mxu0 %v245
        %392 = vmatpush2.msra.mxu0 %v244
        %393 = vmatprep.subr.mxu0 %v243
        %394 = vmatpush2.msra.mxu0 %v242
        %395 = vmatprep.subr.mxu0 %v241
        %396 = vmatpush2.msra.mxu0 %v240
        %397 = vmatprep.subr.mxu0 %v239
        %398 = vmatpush2.msra.mxu0 %v238
        %399 = vmatprep.subr.mxu0 %v237
        %400 = vmatpush2.msra.mxu0 %v236
        %401 = vmatprep.subr.mxu0 %v235
        %402 = vmatpush2.msra.mxu0 %v234
        %403 = vmatprep.subr.mxu0 %v233
        %404 = vmatpush2.msra.mxu0 %v232
        %405 = vmatprep.subr.mxu0 %v231
        %406 = vmatpush2.msra.mxu0 %v230
        %407 = vmatprep.subr.mxu0 %v229
        %408 = vmatpush2.msra.mxu0 %v228
        %409 = vmatprep.mubr.f32.mxu0 %v332
        %410 = vmatmul.mubr.f32.gmra.mxu0 %v328
        %v411 = vpop.f32.mrf.mxu0
        %v412 = vadd.f32 0.0, %v411
        %v413 = vpop.f32.mrf.mxu0
        %v414 = vadd.f32 0.0, %v413
        %415 = vdwg.mxu0
        %416 = vmatprep.subr.mxu0 %v291
        %417 = vmatpush1.msra.mxu0 %v290
        %418 = vmatprep.subr.mxu0 %v289
        %419 = vmatpush1.msra.mxu0 %v288
        %420 = vmatprep.subr.mxu0 %v287
        %421 = vmatpush1.msra.mxu0 %v286
        %422 = vmatprep.subr.mxu0 %v285
        %423 = vmatpush1.msra.mxu0 %v284
        %424 = vmatprep.subr.mxu0 %v283
        %425 = vmatpush1.msra.mxu0 %v282
        %426 = vmatprep.subr.mxu0 %v281
        %427 = vmatpush1.msra.mxu0 %v280
        %428 = vmatprep.subr.mxu0 %v279
        %429 = vmatpush1.msra.mxu0 %v278
        %430 = vmatprep.subr.mxu0 %v277
        %431 = vmatpush1.msra.mxu0 %v276
        %432 = vmatprep.subr.mxu0 %v275
        %433 = vmatpush1.msra.mxu0 %v274
        %434 = vmatprep.subr.mxu0 %v273
        %435 = vmatpush1.msra.mxu0 %v272
        %436 = vmatprep.subr.mxu0 %v271
        %437 = vmatpush1.msra.mxu0 %v270
        %438 = vmatprep.subr.mxu0 %v269
        %439 = vmatpush1.msra.mxu0 %v268
        %440 = vmatprep.subr.mxu0 %v267
        %441 = vmatpush1.msra.mxu0 %v266
        %442 = vmatprep.subr.mxu0 %v265
        %443 = vmatpush1.msra.mxu0 %v264
        %444 = vmatprep.subr.mxu0 %v263
        %445 = vmatpush1.msra.mxu0 %v262
        %446 = vmatprep.subr.mxu0 %v261
        %447 = vmatpush1.msra.mxu0 %v260
        %448 = vmatprep.subr.mxu0 %v323
        %449 = vmatpush2.msra.mxu0 %v322
        %450 = vmatprep.subr.mxu0 %v321
        %451 = vmatpush2.msra.mxu0 %v320
        %452 = vmatprep.subr.mxu0 %v319
        %453 = vmatpush2.msra.mxu0 %v318
        %454 = vmatprep.subr.mxu0 %v317
        %455 = vmatpush2.msra.mxu0 %v316
        %456 = vmatprep.subr.mxu0 %v315
        %457 = vmatpush2.msra.mxu0 %v314
        %458 = vmatprep.subr.mxu0 %v313
        %459 = vmatpush2.msra.mxu0 %v312
        %460 = vmatprep.subr.mxu0 %v311
        %461 = vmatpush2.msra.mxu0 %v310
        %462 = vmatprep.subr.mxu0 %v309
        %463 = vmatpush2.msra.mxu0 %v308
        %464 = vmatprep.subr.mxu0 %v307
        %465 = vmatpush2.msra.mxu0 %v306
        %466 = vmatprep.subr.mxu0 %v305
        %467 = vmatpush2.msra.mxu0 %v304
        %468 = vmatprep.subr.mxu0 %v303
        %469 = vmatpush2.msra.mxu0 %v302
        %470 = vmatprep.subr.mxu0 %v301
        %471 = vmatpush2.msra.mxu0 %v300
        %472 = vmatprep.subr.mxu0 %v299
        %473 = vmatpush2.msra.mxu0 %v298
        %474 = vmatprep.subr.mxu0 %v297
        %475 = vmatpush2.msra.mxu0 %v296
        %476 = vmatprep.subr.mxu0 %v295
        %477 = vmatpush2.msra.mxu0 %v294
        %478 = vmatprep.subr.mxu0 %v293
        %479 = vmatpush2.msra.mxu0 %v292
        %480 = vmatprep.mubr.f32.mxu0 %v340
        %481 = vmatmul.mubr.f32.gmra.mxu0 %v336
        %v482 = vpop.f32.mrf.mxu0
        %v483 = vadd.f32 %v412, %v482
        %v484 = vpop.f32.mrf.mxu0
        %v485 = vadd.f32 %v414, %v484
        %486 = vdwg.mxu0
        %v487 = vxor.u32 %v483, 2147483648
        %v488 = vxor.u32 %v485, 2147483648
        %v489 = vmul.f32 %v487, 1.442695
        %v490 = vpow.pop %v489
        %v491 = vmul.f32 %v488, 1.442695
        %v492 = vpow.pop %v491
        %v493 = vadd.f32 %v490, 1.0
        %v494 = vadd.f32 %v492, 1.0
        %v495 = vrcp.pop %v493
        %v496 = vmul.f32 1.0, %v495
        %v497 = vrcp.pop %v494
        %v498 = vmul.f32 1.0, %v497
        %v501 = vcombine.low %v496, %v498
        %v503 = vunpack.c.l.s4 1966171168
        %v504 = vunpack.c.0.s8 %v503
        %v505 = vlaneseq
        %v506 = vshrl.u32 %v505, 7
        %v507 = vsub.s32 %v504, %v506
        %v508 = vrot.slane %v501, %v507
        %v510 = vunpack.c.l.s4 1966171168
        %v511 = vunpack.c.0.s8 %v510
        %v512 = vlaneseq
        %v513 = vshrl.u32 %v512, 7
        %v514 = vsub.s32 %v511, %v513
        %v515 = vrot.slane %v508, %v514
        %v517 = vlaneseq
        %vm518 = vcmp.ge.s32.totalorder %v517, 0
        %vm519 = vcmp.lt.s32.totalorder %v517, 256
        %vm520 = vmand %vm518, %vm519
        %521 = vst.msk [vmem:[%s192] sm:$0x3] %vm520, %v515
        %s522 = sand.u32 %s91, 1
        %s523 = scalar_lea.sflag [#allocation4], %s522
        %s524 = sand.u32 %s91, 1
        %s525 = smul.addr %s524, 2
        %s526 = scalar_lea.vmem [#allocation7], %s525
        // Predicated region
        $region37: #{tpu_custom_call.1} parent=27 // pred_check
          %p527 = pneg %p101
        $region38: #{tpu_custom_call.1} parent=27 // pred_check_branch
          %529 = sbr.rel (%p527) target = $region40
        $region39: #{tpu_custom_call.1} parent=27 // pred_region
          %s530 = smul.u32 2, %s25
          %s532 = ssub.s32 32, 32
          %533 = vsyncadd %s523, %s532
          %s534 = smul.addr %s24, 2
          %s535 = sadd.s32 %s530, %s534
          %s536 = smul.addr %s535, 16
          %s537 = scalar_lea.hbm %s2, %s536
          %s539 = sshll.u32 %s526, 4
          %s540 = int_to_ptr.vmem [resolvable:$true] %s539
          %542 = dma.vmem_to_hbm [thread:$0]  %s540, 32, %s537, %s523
        $region40: #{tpu_custom_call.1} parent=27 // pred_fallthru
          _
      $region28: #{tpu_custom_call.1} parent=5 // pred_fallthru
        _
      %p543 = scmp.le.s32.totalorder 2, %s15
      // Predicated region
      $region41: #{tpu_custom_call.1} parent=5 // pred_check
        %p544 = pneg %p543
      $region42: #{tpu_custom_call.1} parent=5 // pred_check_branch
        %546 = sbr.rel (%p544) target = $region44
      $region43: #{tpu_custom_call.1} parent=5 // pred_region
        %s547 = ssub.s32 %s15, 2
        // Predicated region
        $region45: #{tpu_custom_call.1} parent=43 // pred_check
          %p548 = pneg %p107
        $region46: #{tpu_custom_call.1} parent=43 // pred_check_branch
          %550 = sbr.rel (%p548) target = $region48
        $region47: #{tpu_custom_call.1} parent=43 // pred_region
          %s551 = sand.u32 %s92, 1
          %s552 = scalar_lea.sflag [#allocation4], %s551
          %s553 = sand.u32 %s92, 1
          %s554 = smul.addr %s553, 2
          %s555 = scalar_lea.vmem [#allocation7], %s554
          %556 = dma.done %s552, 32
        $region48: #{tpu_custom_call.1} parent=43 // pred_fallthru
          _
      $region44: #{tpu_custom_call.1} parent=5 // pred_fallthru
        _
    $region6: #{tpu_custom_call.1} parent=1 // loop_footer
      %s19 = sadd.s32 1, %s15
    $region7: #{tpu_custom_call.1} parent=1 // loop_footer_branch
      %14 = sbr.rel target = $region3
    $region8: #{tpu_custom_call.1} parent=1 // loop_exit
      _
    %557 = vsyncpa [#allocation3], 1
    %s558 = scalar_lea.sflag [#allocation3], 1
    %559 = vsyncpa %s558, 1
    %560 = vsyncpa [#allocation6], 1
    %561 = vsyncpa [#allocation4], 1
    %s562 = scalar_lea.sflag [#allocation4], 1
    %563 = vsyncpa %s562, 1

</llo_original>
